<compile_context>
chip_gen: v6e
topology: v6e:2x2x1
jax: 0.10.0
libtpu: 0.0.40
codegen_flags: <defaults>
</compile_context>

<pallas_src>
import functools

import jax
import jax.numpy as jnp
from jax.experimental import pallas as pl
from jax.experimental.pallas import tpu as pltpu


# ----------------------------------------------------------------------------
# Elementwise base losses (reduction='none' equivalents).
# ----------------------------------------------------------------------------
def _elementwise_loss(x, y, kind):
    if kind == "mse":
        d = x - y
        return d * d
    if kind == "l1":
        return jnp.abs(x - y)
    if kind == "bce_logits":
        # numerically stable binary cross-entropy with logits
        return jnp.maximum(x, 0.0) - x * y + jnp.log1p(jnp.exp(-jnp.abs(x)))
    raise ValueError(f"unsupported elementwise loss: {kind}")


# ----------------------------------------------------------------------------
# Kernels: one row tile per grid step, per-column partial sums out.
# ----------------------------------------------------------------------------
def _masked_loss_kernel(x_ref, y_ref, sum_ref, cnt_ref, *, kind, n_rows, tb):
    i = pl.program_id(0)
    x = x_ref[...].astype(jnp.float32)                       # (tb, cols)
    y = y_ref[...].astype(jnp.float32)

    row = jax.lax.broadcasted_iota(jnp.int32, x.shape, 0)
    in_bounds = (i * tb + row) < n_rows                      # ragged last tile
    w = jnp.logical_and(y == y, in_bounds)                   # mask = (gt == gt); NaN -> drop
    wf = w.astype(jnp.float32)

    # Zero-out dropped / padded entries so NaN labels and OOB garbage stay finite
    # (they carry zero weight, so the semantics are identical to the torch clone+assign).
    xs = jnp.where(w, x, 0.0)
    ys = jnp.where(w, y, 0.0)
    l = _elementwise_loss(xs, ys, kind) * wf

    cols = l.shape[1]
    sum_ref[...] = jnp.sum(l, axis=0, keepdims=True).reshape(1, 1, cols)
    cnt_ref[...] = jnp.sum(wf, axis=0, keepdims=True).reshape(1, 1, cols)


def _weighted_loss_kernel(x_ref, y_ref, w_ref, sum_ref, cnt_ref, *, kind, n_rows, tb):
    i = pl.program_id(0)
    x = x_ref[...].astype(jnp.float32)
    y = y_ref[...].astype(jnp.float32)
    w = w_ref[...].astype(jnp.float32)

    row = jax.lax.broadcasted_iota(jnp.int32, x.shape, 0)
    in_bounds = (i * tb + row) < n_rows
    wf = jnp.where(in_bounds, w, 0.0)
    xs = jnp.where(in_bounds, x, 0.0)                        # keep padded rows finite
    ys = jnp.where(in_bounds, y, 0.0)
    l = _elementwise_loss(xs, ys, kind) * wf

    cols = l.shape[1]
    sum_ref[...] = jnp.sum(l, axis=0, keepdims=True).reshape(1, 1, cols)
    cnt_ref[...] = jnp.sum(wf, axis=0, keepdims=True).reshape(1, 1, cols)


# ----------------------------------------------------------------------------
# Wrapper: layout / tiling decisions + tiny finalize.
# ----------------------------------------------------------------------------
def _choose_pack(rows, cols, lane_target):
    """Largest k dividing `rows` with k*cols <= 1024, stopping once k*cols >= lane_target."""
    best = 1
    for k in range(1, min(rows, 1024) + 1):
        if rows % k:
            continue
        if k * cols > 1024:
            break
        best = k
        if k * cols >= lane_target:
            break
    return best


def _run(logits, ground_truth, weights, *, kind, row_tile, lane_target):
    x = jnp.asarray(logits)                                  # keep native dtype (no HBM upcast)
    y = jnp.asarray(ground_truth)
    w = None if weights is None else jnp.asarray(weights)

    if x.ndim == 1:
        x, y = x[:, None], y[:, None]
        if w is not None:
            w = w[:, None]
    elif x.ndim > 2:
        # sum(dim=0) then mean over the rest == flatten trailing dims into columns.
        b0 = x.shape[0]
        x, y = x.reshape(b0, -1), y.reshape(b0, -1)
        if w is not None:
            w = w.reshape(b0, -1)
    b, t = x.shape

    # Lane-density: (b, t) -> (b//k, k*t) is a free reshape of contiguous row-major data.
    k = _choose_pack(b, t, lane_target)
    rows, cols = b // k, k * t
    x2, y2 = x.reshape(rows, cols), y.reshape(rows, cols)
    w2 = None if w is None else w.reshape(rows, cols)

    if rows > row_tile:
        tb = max(8, (row_tile // 8) * 8)                     # multiple of 8 (sublane tiling)
    else:
        tb = rows                                            # block == full dim is always legal
    num_tiles = pl.cdiv(rows, tb)

    block2d = pl.BlockSpec((tb, cols), lambda i: (i, 0))
    out_spec = pl.BlockSpec((1, 1, cols), lambda i: (i, 0, 0))
    out_shape = jax.ShapeDtypeStruct((num_tiles, 1, cols), jnp.float32)

    if w2 is None:
        kernel = functools.partial(_masked_loss_kernel, kind=kind, n_rows=rows, tb=tb)
        in_specs, operands = [block2d, block2d], (x2, y2)
    else:
        kernel = functools.partial(_weighted_loss_kernel, kind=kind, n_rows=rows, tb=tb)
        in_specs, operands = [block2d, block2d, block2d], (x2, y2, w2)

    sums, cnts = pl.pallas_call(
        kernel,
        out_shape=(out_shape, out_shape),
        grid=(num_tiles,),
        in_specs=in_specs,
        out_specs=(out_spec, out_spec),
        compiler_params=pltpu.CompilerParams(dimension_semantics=("parallel",)),
    )(*operands)

    # Tiny finalize (num_tiles * cols elements): fold the lane packing back to t columns,
    # apply the +1e-8 guarded divide and the column mean.  Pure glue, not a hot path.
    col_sum = sums.reshape(num_tiles, k, t).sum(axis=(0, 1))
    col_wgt = cnts.reshape(num_tiles, k, t).sum(axis=(0, 1))
    return (col_sum / (col_wgt + 1e-8)).mean()


def masked_loss(logits, ground_truth, *, kind="mse", row_tile=512, lane_target=256):
    return _run(logits, ground_truth, None, kind=kind, row_tile=row_tile, lane_target=lane_target)


def weighted_loss(logits, ground_truth, weights, *, kind="mse", row_tile=512, lane_target=256):
    return _run(logits, ground_truth, weights, kind=kind, row_tile=row_tile, lane_target=lane_target)


# ----------------------------------------------------------------------------
# Module-like wrappers (forward only).
# ----------------------------------------------------------------------------
class WeightedLoss:
    """Equivalent of kmol WeightedLoss(loss); `loss` names the elementwise base loss."""

    def __init__(self, loss: str = "mse"):
        self._kind = loss

    def __call__(self, logits, ground_truth, weights):
        return weighted_loss(logits, ground_truth, weights, kind=self._kind)


class MaskedLoss:
    """Equivalent of kmol MaskedLoss(loss): NaN labels are dropped (mask built in-kernel,
    ground-truth NaNs replaced by 0 before the base loss, exactly like the torch clone+assign)."""

    def __init__(self, loss: str = "mse"):
        self._kind = loss

    def __call__(self, logits, ground_truth):
        return masked_loss(logits, ground_truth, kind=self._kind)


# ----------------------------------------------------------------------------
# Pure-JAX references for correctness checks.
# ----------------------------------------------------------------------------
def _ref_masked(logits, gt, kind):
    mask = gt == gt
    gt0 = jnp.where(mask, gt, 0.0)
    l = _elementwise_loss(logits.astype(jnp.float32), gt0.astype(jnp.float32), kind)
    w = mask.astype(jnp.float32)
    return ((l * w).sum(0) / (w.sum(0) + 1e-8)).mean()


def _ref_weighted(logits, gt, weights, kind):
    l = _elementwise_loss(logits.astype(jnp.float32), gt.astype(jnp.float32), kind)
    w = weights.astype(jnp.float32)
    return ((l * w).sum(0) / (w.sum(0) + 1e-8)).mean()


if __name__ == "__main__":
    key = jax.random.PRNGKey(0)
    ks = jax.random.split(key, 8)

    def _close(a, b, tol=1e-4):
        a, b = float(a), float(b)
        return abs(a - b) < tol * max(1.0, abs(b))

    # --- case 1: MaskedLoss(MSE), B=64, T=10, ~20% NaN labels (lane-packing path) ---
    B, T = 64, 10
    logits = jax.random.normal(ks[0], (B, T), jnp.float32)
    gt = jax.random.normal(ks[1], (B, T), jnp.float32)
    gt = jnp.where(jax.random.bernoulli(ks[2], 0.2, (B, T)), jnp.nan, gt)
    crit = MaskedLoss("mse")
    out1 = jax.block_until_ready(crit(logits, gt))
    ref1 = _ref_masked(logits, gt, "mse")
    assert bool(jnp.isfinite(out1)) and _close(out1, ref1), (out1, ref1)

    # --- case 2: MaskedLoss(BCEWithLogits), B=60, T=7, multi-tile grid + ragged last tile ---
    B2, T2 = 60, 7
    logits2 = jax.random.normal(ks[3], (B2, T2), jnp.float32) * 2.0
    labels2 = jax.random.bernoulli(ks[4], 0.5, (B2, T2)).astype(jnp.float32)
    labels2 = jnp.where(jax.random.bernoulli(ks[5], 0.3, (B2, T2)), jnp.nan, labels2)
    out2 = jax.block_until_ready(
        masked_loss(logits2, labels2, kind="bce_logits", row_tile=16, lane_target=1))
    ref2 = _ref_masked(logits2, labels2, "bce_logits")
    assert bool(jnp.isfinite(out2)) and _close(out2, ref2), (out2, ref2)

    # --- case 3: WeightedLoss(MSE) with explicit non-binary weights, B=32, T=12 ---
    B3, T3 = 32, 12
    lg = jax.random.normal(ks[6], (B3, T3), jnp.float32)
    tg = jax.random.normal(ks[7], (B3, T3), jnp.float32)
    wt = jax.random.uniform(jax.random.PRNGKey(1), (B3, T3), jnp.float32)
    out3 = jax.block_until_ready(WeightedLoss("mse")(lg, tg, wt))
    ref3 = _ref_weighted(lg, tg, wt, "mse")
    assert bool(jnp.isfinite(out3)) and _close(out3, ref3), (out3, ref3)

    print("KERNEL_OK")
</pallas_src>

<mosaic_0001>
module attributes {stable_mosaic.version = 11 : i64} {
  func.func @_masked_loss_kernel(%arg0: i32, %arg1: memref<2x320xf32, #tpu.memory_space<vmem>>, %arg2: memref<2x320xf32, #tpu.memory_space<vmem>>, %arg3: memref<1x1x320xf32, #tpu.memory_space<vmem>>, %arg4: memref<1x1x320xf32, #tpu.memory_space<vmem>>) attributes {dimension_semantics = [#tpu.dimension_semantics<parallel>], iteration_bounds = array<i64: 1>, scalar_prefetch = 0 : i64, scratch_operands = 0 : i64, tpu.core_type = #tpu.core_type<tc>, window_params = [{transform_indices = @transform_0, window_bounds = array<i64: 2, 320>}, {transform_indices = @transform_1, window_bounds = array<i64: 2, 320>}, {transform_indices = @transform_2, window_bounds = array<i64: 1, 1, 320>}, {transform_indices = @transform_3, window_bounds = array<i64: 1, 1, 320>}]} {
    %c0 = arith.constant 0 : index
    %c0_0 = arith.constant 0 : index
    %0 = vector.load %arg1[%c0, %c0_0] : memref<2x320xf32, #tpu.memory_space<vmem>>, vector<2x320xf32>
    %c0_1 = arith.constant 0 : index
    %c0_2 = arith.constant 0 : index
    %1 = vector.load %arg2[%c0_1, %c0_2] : memref<2x320xf32, #tpu.memory_space<vmem>>, vector<2x320xf32>
    %2 = tpu.iota {dimensions = array<i32: 0>} : vector<2x320xi32>
    %c2_i32 = arith.constant 2 : i32
    %3 = arith.muli %arg0, %c2_i32 : i32
    %4 = vector.broadcast %3 : i32 to vector<2x320xi32>
    %5 = arith.addi %4, %2 : vector<2x320xi32>
    %c2_i32_3 = arith.constant 2 : i32
    %6 = vector.broadcast %c2_i32_3 : i32 to vector<2x320xi32>
    %7 = arith.cmpi slt, %5, %6 : vector<2x320xi32>
    %8 = arith.cmpf oeq, %1, %1 : vector<2x320xf32>
    %9 = arith.andi %8, %7 : vector<2x320xi1>
    %10 = arith.extui %9 : vector<2x320xi1> to vector<2x320xi32>
    %11 = arith.sitofp %10 : vector<2x320xi32> to vector<2x320xf32>
    %cst = arith.constant 0.000000e+00 : f32
    %12 = vector.broadcast %cst : f32 to vector<2x320xf32>
    %13 = arith.select %9, %0, %12 : vector<2x320xi1>, vector<2x320xf32>
    %cst_4 = arith.constant 0.000000e+00 : f32
    %14 = vector.broadcast %cst_4 : f32 to vector<2x320xf32>
    %15 = arith.select %9, %1, %14 : vector<2x320xi1>, vector<2x320xf32>
    %16 = arith.subf %13, %15 : vector<2x320xf32>
    %17 = arith.mulf %16, %16 : vector<2x320xf32>
    %18 = arith.mulf %17, %11 : vector<2x320xf32>
    %cst_5 = arith.constant dense<0.000000e+00> : vector<320xf32>
    %19 = vector.multi_reduction <add>, %18, %cst_5 [0] : vector<2x320xf32> to vector<320xf32>
    %20 = vector.shape_cast %19 : vector<320xf32> to vector<1x320xf32>
    %21 = vector.shape_cast %20 : vector<1x320xf32> to vector<1x1x320xf32>
    %c0_6 = arith.constant 0 : index
    %c0_7 = arith.constant 0 : index
    %c0_8 = arith.constant 0 : index
    %22 = vector.load %arg3[%c0_6, %c0_7, %c0_8] : memref<1x1x320xf32, #tpu.memory_space<vmem>>, vector<1x1x320xf32>
    tpu.vector_store %arg3[%c0_6, %c0_7, %c0_8], %21 {strides = array<i32>} : memref<1x1x320xf32, #tpu.memory_space<vmem>>, vector<1x1x320xf32>,
    %cst_9 = arith.constant dense<0.000000e+00> : vector<320xf32>
    %23 = vector.multi_reduction <add>, %11, %cst_9 [0] : vector<2x320xf32> to vector<320xf32>
    %24 = vector.shape_cast %23 : vector<320xf32> to vector<1x320xf32>
    %25 = vector.shape_cast %24 : vector<1x320xf32> to vector<1x1x320xf32>
    %c0_10 = arith.constant 0 : index
    %c0_11 = arith.constant 0 : index
    %c0_12 = arith.constant 0 : index
    %26 = vector.load %arg4[%c0_10, %c0_11, %c0_12] : memref<1x1x320xf32, #tpu.memory_space<vmem>>, vector<1x1x320xf32>
    tpu.vector_store %arg4[%c0_10, %c0_11, %c0_12], %25 {strides = array<i32>} : memref<1x1x320xf32, #tpu.memory_space<vmem>>, vector<1x1x320xf32>,
    return
  }
  func.func @transform_0(%arg0: i32) -> (i32, i32) {
    %c0_i32 = arith.constant 0 : i32
    %c0_i32_0 = arith.constant 0 : i32
    return %arg0, %c0_i32 : i32, i32
  }
  func.func @transform_1(%arg0: i32) -> (i32, i32) {
    %c0_i32 = arith.constant 0 : i32
    %c0_i32_0 = arith.constant 0 : i32
    return %arg0, %c0_i32 : i32, i32
  }
  func.func @transform_2(%arg0: i32) -> (i32, i32, i32) {
    %c0_i32 = arith.constant 0 : i32
    %c0_i32_0 = arith.constant 0 : i32
    %c0_i32_1 = arith.constant 0 : i32
    return %arg0, %c0_i32, %c0_i32_0 : i32, i32, i32
  }
  func.func @transform_3(%arg0: i32) -> (i32, i32, i32) {
    %c0_i32 = arith.constant 0 : i32
    %c0_i32_0 = arith.constant 0 : i32
    %c0_i32_1 = arith.constant 0 : i32
    return %arg0, %c0_i32, %c0_i32_0 : i32, i32, i32
  }
}

</mosaic_0001>

<llo_original>
// kernel: tpu_custom_call.1
$region0: #{tpu_custom_call.1}
  #allocation0 [shape = 'u32[]', space=smem, size = 0x4, offset = 0x4, fixed_abs, tag = 'smem constant byte address 0x4 - core index']
  #allocation1 [shape = 'u32[144,128]{1,0:T(1,128)}', space=vmem, size = 0x12000, scoped, tag = 'internal scratch']
  %s0 = inlined_call_operand.hbm [shape: f32[2,320], index: 0, kind: input, shape index: {}]
  %s1 = inlined_call_operand.hbm [shape: f32[2,320], index: 1, kind: input, shape index: {}]
  %s2 = inlined_call_operand.hbm [shape: f32[1,1,320], index: 2, kind: output, shape index: {0}]
  %s3 = inlined_call_operand.hbm [shape: f32[1,1,320], index: 3, kind: output, shape index: {1}]
  %4 = xla_tuple %s2, %s3
  %s5 = sld [smem:[#allocation0]]
  $region34: #{tpu_custom_call.1} parent=0
    _
  %s7 = ssub.s32 1, %s5
  %s8 = scalar_select 0, %s7, %s5
  $region1: #{tpu_custom_call.1} parent=0
    #allocation2 [shape = 'u8[3072]{0}', space=vmem, size = 0xc00, scoped, tag = 'input window, operand 0, single buffered']
    #allocation3 [shape = 's32[1]{0}', space=sflag, size = 0x4, scoped, tag = 'scoped memory for tpu_custom_call.1']
    #allocation4 [shape = 's32[1]{0}', space=sflag, size = 0x4, scoped, tag = 'scoped memory for tpu_custom_call.1']
    #allocation5 [shape = 'u8[3072]{0}', space=vmem, size = 0xc00, scoped, tag = 'input window, operand 1, single buffered']
    #allocation6 [shape = 's32[1]{0}', space=sflag, size = 0x4, scoped, tag = 'scoped memory for tpu_custom_call.1']
    #allocation7 [shape = 'u8[1536]{0}', space=vmem, size = 0x800, scoped, tag = 'output window, operand 0, single buffered']
    #allocation8 [shape = 'u8[1536]{0}', space=vmem, size = 0x800, scoped, tag = 'output window, operand 1, single buffered']
    #allocation9 [shape = 's32[1]{0}', space=sflag, size = 0x4, scoped, tag = 'scoped memory for tpu_custom_call.1']
    %9 = vsyncpa [#allocation3], 0
    %10 = vsyncpa [#allocation6], 0
    %11 = vsyncpa [#allocation4], 0
    %12 = vsyncpa [#allocation9], 0
    // Predicated region
    $region2: #{tpu_custom_call.1} parent=1 // pred_check
      _
    $region3: #{tpu_custom_call.1} parent=1 // pred_check_branch
      %14 = sbr.rel (0) target = $region5
    $region4: #{tpu_custom_call.1} parent=1 // pred_region
      %s16 = ssub.s32 96, 96
      %17 = vsyncadd [#allocation3], %s16
      %s19 = sshll.u32 [#allocation2], 4
      %s20 = int_to_ptr.vmem [resolvable:$true] %s19
      %22 = dma.hbm_to_vmem [thread:$0]  %s0, 96, %s20, [#allocation3]
    $region5: #{tpu_custom_call.1} parent=1 // pred_fallthru
      _
    // Predicated region
    $region6: #{tpu_custom_call.1} parent=1 // pred_check
      _
    $region7: #{tpu_custom_call.1} parent=1 // pred_check_branch
      %24 = sbr.rel (0) target = $region9
    $region8: #{tpu_custom_call.1} parent=1 // pred_region
      %s26 = ssub.s32 96, 96
      %27 = vsyncadd [#allocation6], %s26
      %s29 = sshll.u32 [#allocation5], 4
      %s30 = int_to_ptr.vmem [resolvable:$true] %s29
      %32 = dma.hbm_to_vmem [thread:$0]  %s1, 96, %s30, [#allocation6]
    $region9: #{tpu_custom_call.1} parent=1 // pred_fallthru
      _
    // Predicated region
    $region10: #{tpu_custom_call.1} parent=1 // pred_check
      _
    $region11: #{tpu_custom_call.1} parent=1 // pred_check_branch
      %34 = sbr.rel (0) target = $region13
    $region12: #{tpu_custom_call.1} parent=1 // pred_region
      %35 = dma.done [#allocation3], 96
    $region13: #{tpu_custom_call.1} parent=1 // pred_fallthru
      _
    // Predicated region
    $region14: #{tpu_custom_call.1} parent=1 // pred_check
      _
    $region15: #{tpu_custom_call.1} parent=1 // pred_check_branch
      %37 = sbr.rel (0) target = $region17
    $region16: #{tpu_custom_call.1} parent=1 // pred_region
      %38 = dma.done [#allocation6], 96
    $region17: #{tpu_custom_call.1} parent=1 // pred_fallthru
      _
    %v39 = vld [vmem:[#allocation2] sm:$0x3f]
    %v40 = vld [vmem:[#allocation5] sm:$0x3f]
    %v41 = vlaneseq
    %v42 = vshrl.u32 %v41, 7
    %s43 = smul.u32 0, 2
    %v44 = vstv %s43
    %v45 = vadd.s32 %v44, %v42
    %vm46 = vcmp.lt.s32.totalorder %v45, 2
    %vm47 = vcmp.eq.f32.partialorder %v40, %v40
    %v48 = vsel %vm46, 1, 0
    %v50 = vunpack.c.l.s4 269488144
    %v51 = vunpack.c.0.s8 %v50
    %v52 = vlaneseq
    %v53 = vshrl.u32 %v52, 7
    %v54 = vsub.s32 %v51, %v53
    %v55 = vrot.slane %v48, %v54
    %vm56 = vcmp.ne.s32.totalorder %v55, 0
    %vm57 = vmand %vm47, %vm56
    %v58 = vsel %vm57, 1, 0
    %v59 = vcvt.s32.f32 %v58
    %v60 = vsel %vm57, %v39, 0.0
    %v61 = vsel %vm57, %v40, 0.0
    %v62 = vsub.f32 %v60, %v61
    %v63 = vmul.f32 %v62, %v62
    %v64 = vmul.f32 %v63, %v59
    %v66 = vcombine.high %v64, %v64
    %v68 = vunpack.c.l.s4 1983009808
    %v69 = vunpack.c.0.s8 %v68
    %v70 = vlaneseq
    %v71 = vshrl.u32 %v70, 7
    %v72 = vsub.s32 %v69, %v71
    %v73 = vrot.slane %v64, %v72
    %v75 = vunpack.c.l.s4 1983009808
    %v76 = vunpack.c.0.s8 %v75
    %v77 = vlaneseq
    %v78 = vshrl.u32 %v77, 7
    %v79 = vsub.s32 %v76, %v78
    %v80 = vrot.slane %v66, %v79
    %v81 = vcombine.high %v73, %v73
    %vm85 = vcmask 1041408
    %v86 = vsel %vm85, %v73, 0.0
    %v87 = vrot.slane %v86, 4
    %v88 = vadd.f32 %v86, %v87
    %v89 = vrot.slane %v88, 2
    %v90 = vadd.f32 %v88, %v89
    %v91 = vrot.slane %v90, 1
    %v92 = vadd.f32 %v90, %v91
    %v93 = vsel %vm85, %v81, 0.0
    %v94 = vrot.slane %v93, 4
    %v95 = vadd.f32 %v93, %v94
    %v96 = vrot.slane %v95, 2
    %v97 = vadd.f32 %v95, %v96
    %v98 = vrot.slane %v97, 1
    %v99 = vadd.f32 %v97, %v98
    %vm100 = vcmask 517120
    %v101 = vsel %vm100, %v80, 0.0
    %v102 = vrot.slane %v101, 4
    %v103 = vadd.f32 %v101, %v102
    %v104 = vrot.slane %v103, 2
    %v105 = vadd.f32 %v103, %v104
    %v106 = vrot.slane %v105, 1
    %v107 = vadd.f32 %v105, %v106
    %v111 = vcombine.low %v92, %v99
    %v113 = vunpack.c.l.s4 1966171168
    %v114 = vunpack.c.0.s8 %v113
    %v115 = vlaneseq
    %v116 = vshrl.u32 %v115, 7
    %v117 = vsub.s32 %v114, %v116
    %v118 = vrot.slane %v111, %v117
    %v120 = vunpack.c.l.s4 1966171168
    %v121 = vunpack.c.0.s8 %v120
    %v122 = vlaneseq
    %v123 = vshrl.u32 %v122, 7
    %v124 = vsub.s32 %v121, %v123
    %v125 = vrot.slane %v107, %v124
    %v126 = vcombine.low %v118, %v125
    %v128 = vunpack.c.l.s4 1966171168
    %v129 = vunpack.c.0.s8 %v128
    %v130 = vlaneseq
    %v131 = vshrl.u32 %v130, 7
    %v132 = vsub.s32 %v129, %v131
    %v133 = vrot.slane %v126, %v132
    %v135 = vlaneseq
    %vm136 = vcmp.ge.s32.totalorder %v135, 0
    %vm137 = vcmp.lt.s32.totalorder %v135, 320
    %vm138 = vmand %vm136, %vm137
    %139 = vst.msk [vmem:[#allocation7] sm:$0x7] %vm138, %v133
    %v141 = vcombine.high %v59, %v59
    %v143 = vunpack.c.l.s4 1983009808
    %v144 = vunpack.c.0.s8 %v143
    %v145 = vlaneseq
    %v146 = vshrl.u32 %v145, 7
    %v147 = vsub.s32 %v144, %v146
    %v148 = vrot.slane %v59, %v147
    %v150 = vunpack.c.l.s4 1983009808
    %v151 = vunpack.c.0.s8 %v150
    %v152 = vlaneseq
    %v153 = vshrl.u32 %v152, 7
    %v154 = vsub.s32 %v151, %v153
    %v155 = vrot.slane %v141, %v154
    %v156 = vcombine.high %v148, %v148
    %v160 = vsel %vm85, %v148, 0.0
    %v161 = vrot.slane %v160, 4
    %v162 = vadd.f32 %v160, %v161
    %v163 = vrot.slane %v162, 2
    %v164 = vadd.f32 %v162, %v163
    %v165 = vrot.slane %v164, 1
    %v166 = vadd.f32 %v164, %v165
    %v167 = vsel %vm85, %v156, 0.0
    %v168 = vrot.slane %v167, 4
    %v169 = vadd.f32 %v167, %v168
    %v170 = vrot.slane %v169, 2
    %v171 = vadd.f32 %v169, %v170
    %v172 = vrot.slane %v171, 1
    %v173 = vadd.f32 %v171, %v172
    %v174 = vsel %vm100, %v155, 0.0
    %v175 = vrot.slane %v174, 4
    %v176 = vadd.f32 %v174, %v175
    %v177 = vrot.slane %v176, 2
    %v178 = vadd.f32 %v176, %v177
    %v179 = vrot.slane %v178, 1
    %v180 = vadd.f32 %v178, %v179
    %v184 = vcombine.low %v166, %v173
    %v186 = vunpack.c.l.s4 1966171168
    %v187 = vunpack.c.0.s8 %v186
    %v188 = vlaneseq
    %v189 = vshrl.u32 %v188, 7
    %v190 = vsub.s32 %v187, %v189
    %v191 = vrot.slane %v184, %v190
    %v193 = vunpack.c.l.s4 1966171168
    %v194 = vunpack.c.0.s8 %v193
    %v195 = vlaneseq
    %v196 = vshrl.u32 %v195, 7
    %v197 = vsub.s32 %v194, %v196
    %v198 = vrot.slane %v180, %v197
    %v199 = vcombine.low %v191, %v198
    %v201 = vunpack.c.l.s4 1966171168
    %v202 = vunpack.c.0.s8 %v201
    %v203 = vlaneseq
    %v204 = vshrl.u32 %v203, 7
    %v205 = vsub.s32 %v202, %v204
    %v206 = vrot.slane %v199, %v205
    %208 = vst.msk [vmem:[#allocation8] sm:$0x7] %vm138, %v206
    // Predicated region
    $region18: #{tpu_custom_call.1} parent=1 // pred_check
      _
    $region19: #{tpu_custom_call.1} parent=1 // pred_check_branch
      %210 = sbr.rel (0) target = $region21
    $region20: #{tpu_custom_call.1} parent=1 // pred_region
      %s212 = ssub.s32 48, 48
      %213 = vsyncadd [#allocation4], %s212
      %s215 = sshll.u32 [#allocation7], 4
      %s216 = int_to_ptr.vmem [resolvable:$true] %s215
      %218 = dma.vmem_to_hbm [thread:$0]  %s216, 48, %s2, [#allocation4]
    $region21: #{tpu_custom_call.1} parent=1 // pred_fallthru
      _
    // Predicated region
    $region22: #{tpu_custom_call.1} parent=1 // pred_check
      _
    $region23: #{tpu_custom_call.1} parent=1 // pred_check_branch
      %220 = sbr.rel (0) target = $region25
    $region24: #{tpu_custom_call.1} parent=1 // pred_region
      %s222 = ssub.s32 48, 48
      %223 = vsyncadd [#allocation9], %s222
      %s225 = sshll.u32 [#allocation8], 4
      %s226 = int_to_ptr.vmem [resolvable:$true] %s225
      %228 = dma.vmem_to_hbm [thread:$0]  %s226, 48, %s3, [#allocation9]
    $region25: #{tpu_custom_call.1} parent=1 // pred_fallthru
      _
    // Predicated region
    $region26: #{tpu_custom_call.1} parent=1 // pred_check
      _
    $region27: #{tpu_custom_call.1} parent=1 // pred_check_branch
      %230 = sbr.rel (0) target = $region29
    $region28: #{tpu_custom_call.1} parent=1 // pred_region
      %231 = dma.done [#allocation4], 48
    $region29: #{tpu_custom_call.1} parent=1 // pred_fallthru
      _
    // Predicated region
    $region30: #{tpu_custom_call.1} parent=1 // pred_check
      _
    $region31: #{tpu_custom_call.1} parent=1 // pred_check_branch
      %233 = sbr.rel (0) target = $region33
    $region32: #{tpu_custom_call.1} parent=1 // pred_region
      %234 = dma.done [#allocation9], 48
    $region33: #{tpu_custom_call.1} parent=1 // pred_fallthru
      _
    %235 = vsyncpa [#allocation3], 1
    %236 = vsyncpa [#allocation6], 1
    %237 = vsyncpa [#allocation4], 1
    %238 = vsyncpa [#allocation9], 1

</llo_original>
